<compile_context>
chip_gen: v7x
topology: tpu7x:2x2x1
jax: 0.10.0
libtpu: 0.0.40
codegen_flags: <defaults>
</compile_context>

<pallas_src>
import functools

import jax
import jax.numpy as jnp
from jax.experimental import pallas as pl
from jax.experimental.pallas import tpu as pltpu


# --------------------------------------------------------------------------- helpers

def _round_up(n, m):
    return ((n + m - 1) // m) * m


def _cdiv(a, b):
    return -(-a // b)


def _vmem_capacity_bytes():
    """Per-TensorCore VMEM capacity (128 MiB v5e/v6e, 64 MiB v7x)."""
    try:
        info = pltpu.get_tpu_info()
        cap = getattr(info, "vmem_capacity_bytes", None)
        if cap:
            return int(cap)
    except Exception:
        pass
    return 64 * 1024 * 1024  # conservative default (v7x per-TC)


def _effective_tm(M, tm_req, sublane):
    """Token tile: <= tm_req, sublane-aligned, and (when M allows) >= 2 grid steps
    so both TensorCores on a multi-TC chip (v7x) get work."""
    tm = _round_up(min(tm_req, _round_up(M, sublane)), sublane)
    if _cdiv(M, tm) < 2 and M > sublane:
        tm = _round_up(_cdiv(M, 2), sublane)
    return max(tm, sublane)


def _resident_vmem_bytes(tm, D, H, h_chunk, x_bytes, w_bytes):
    return (2 * D * H * w_bytes          # W1 + W2, resident & single-buffered
            + (H + D) * w_bytes          # b1 + b2
            + 4 * tm * D * x_bytes       # double-buffered x and out tiles
            + tm * D * 4                 # f32 accumulator scratch
            + tm * h_chunk * 4           # live f32 hidden chunk
            + tm * h_chunk * x_bytes)    # hidden cast back to x.dtype for matmul 2


def _stream_vmem_bytes(tm, D, h_blk, x_bytes, w_bytes):
    return (4 * D * h_blk * w_bytes      # double-buffered W1 and W2 h-blocks
            + 2 * h_blk * w_bytes        # double-buffered b1 h-block
            + D * w_bytes                # b2 (single-buffered)
            + 4 * tm * D * x_bytes       # double-buffered x and out tiles
            + tm * D * 4                 # f32 accumulator scratch
            + tm * h_blk * 4             # live f32 hidden block
            + tm * h_blk * x_bytes)      # hidden cast copy


def _resident_chunk_candidates(H):
    """Full H first (n_chunks=1 preferred), then divisors of H that are 128-lane
    multiples, descending, capped at 32 chunks so the static unroll stays small."""
    cands = [H]
    for c in range(H // 128, 0, -1):
        blk = c * 128
        if blk != H and H % blk == 0 and H // blk <= 32:
            cands.append(blk)
    return cands


# --------------------------------------------------------------------------- kernels

def _ffn_kernel_resident(x_ref, w1_ref, b1_ref, w2_ref, b2_ref, o_ref, acc_ref,
                         *, n_chunks, h_chunk):
    """Weights resident in VMEM; hidden dim handled in static 128-aligned chunks.

    x_ref:(tm,D)  w1_ref:(D,H)  b1_ref:(1,H)  w2_ref:(H,D)  b2_ref:(1,D)
    o_ref:(tm,D)  acc_ref:(tm,D) f32 scratch
    """
    x = x_ref[...]
    for c in range(n_chunks):                       # static unroll, small trip count
        lo = c * h_chunk
        h = jnp.dot(x, w1_ref[:, lo:lo + h_chunk],
                    preferred_element_type=jnp.float32)
        h = jnp.maximum(h + b1_ref[:, lo:lo + h_chunk], 0.0)   # linear1 + ReLU
        # Dropout: module evaluated in inference mode -> identity.
        # TODO(synk): training-mode dropout would use pltpu.prng_seed +
        # pltpu.prng_random_bits to mask & 1/(1-p)-rescale h here.
        contrib = jnp.dot(h.astype(x.dtype), w2_ref[lo:lo + h_chunk, :],
                          preferred_element_type=jnp.float32)
        if c == 0:
            acc_ref[...] = contrib
        else:
            acc_ref[...] += contrib
    o_ref[...] = (acc_ref[...] + b2_ref[...]).astype(o_ref.dtype)


def _ffn_kernel_stream(x_ref, w1_ref, b1_ref, w2_ref, b2_ref, o_ref, acc_ref):
    """Weight-streaming variant: grid is (token tiles, H blocks); weights are
    double-buffered h-blocks so their DMA overlaps MXU compute.

    x_ref:(tm,D)  w1_ref:(D,h_blk)  b1_ref:(1,h_blk)  w2_ref:(h_blk,D)
    b2_ref:(1,D)  o_ref:(tm,D)  acc_ref:(tm,D) f32 scratch
    """
    hi = pl.program_id(1)
    x = x_ref[...]
    h = jnp.dot(x, w1_ref[...], preferred_element_type=jnp.float32)
    h = jnp.maximum(h + b1_ref[...], 0.0)           # linear1 + ReLU
    # Dropout: inference mode -> identity (see resident kernel TODO).
    contrib = jnp.dot(h.astype(x.dtype), w2_ref[...],
                      preferred_element_type=jnp.float32)

    @pl.when(hi == 0)
    def _():
        acc_ref[...] = contrib

    @pl.when(hi != 0)
    def _():
        acc_ref[...] += contrib

    @pl.when(hi == pl.num_programs(1) - 1)
    def _():
        o_ref[...] = (acc_ref[...] + b2_ref[...]).astype(o_ref.dtype)


# --------------------------------------------------------------------------- wrapper

@functools.partial(jax.jit, static_argnames=("tm", "force_mode"))
def positionwise_feed_forward(x, w1, b1, w2, b2, *, tm=512, force_mode=None):
    """x: [B, S, D]; w1: [D, H]; b1: [H]; w2: [H, D]; b2: [D].

    Weights are stored pre-transposed so the kernel computes x @ W (== x @ W_torch.T).
    Production path: feed bf16 x/weights (f32 accumulation inside the kernel).
    """
    B, S, D = x.shape
    H = w1.shape[1]
    M = B * S
    x_bytes = x.dtype.itemsize
    w_bytes = w1.dtype.itemsize

    sublane = max(8, 32 // x_bytes)          # 8 (f32), 16 (bf16), 32 (int8/fp8)

    vmem_cap = _vmem_capacity_bytes()        # per-TC: weights replicate per core
    budget = int(vmem_cap * 0.75)            # headroom for compiler/internal scratch

    tm_cands = sorted({t for t in (tm, 256, 128) if t > 0}, reverse=True)

    plan = None
    # 1) weight-resident plan (v5e/v6e, or small layers on v7x)
    if force_mode in (None, "resident"):
        for tm_c in tm_cands:
            tm_eff = _effective_tm(M, tm_c, sublane)
            for h_chunk in _resident_chunk_candidates(H):
                if _resident_vmem_bytes(tm_eff, D, H, h_chunk,
                                        x_bytes, w_bytes) <= budget:
                    plan = ("resident", tm_eff, h_chunk)
                    break
            if plan is not None:
                break
    # 2) weight-streaming plan (large D*H vs v7x's 64 MiB per-TC VMEM)
    if plan is None and force_mode in (None, "stream"):
        h_blk_cands = [hb for hb in (2048, 1024, 512, 256, 128)
                       if hb <= _round_up(H, 128)]
        for tm_c in tm_cands:
            tm_eff = _effective_tm(M, tm_c, sublane)
            for h_blk in h_blk_cands:
                if _stream_vmem_bytes(tm_eff, D, h_blk,
                                      x_bytes, w_bytes) <= budget:
                    plan = ("stream", tm_eff, h_blk)
                    break
            if plan is not None:
                break
    # 3) last resort: smallest configuration (may exceed budget; still attempt)
    if plan is None:
        tm_eff = _effective_tm(M, 128, sublane)
        plan = ("stream", tm_eff, 128) if H > 128 else ("resident", tm_eff, H)

    mode, tm_eff, h_sz = plan
    grid_m = _cdiv(M, tm_eff)
    M_pad = grid_m * tm_eff

    x2d = x.reshape(M, D)
    if M_pad != M:
        x2d = jnp.pad(x2d, ((0, M_pad - M), (0, 0)))
    b1_2d = b1.reshape(1, H)
    b2_2d = b2.reshape(1, D)

    flops = 4 * M_pad * D * H                # two matmuls, 2*M*D*H each
    bytes_accessed = 2 * M_pad * D * x_bytes + (2 * D * H + H + D) * w_bytes
    cost = pl.CostEstimate(flops=flops, transcendentals=0,
                           bytes_accessed=bytes_accessed)

    if mode == "resident":
        h_chunk = h_sz
        n_chunks = H // h_chunk if (h_chunk < H and H % h_chunk == 0) else 1
        if n_chunks == 1:
            h_chunk = H
        need = _resident_vmem_bytes(tm_eff, D, H, h_chunk, x_bytes, w_bytes)
        vmem_limit = min(int(vmem_cap * 0.85), max(need + (4 << 20), 16 << 20))
        kernel = functools.partial(_ffn_kernel_resident,
                                   n_chunks=n_chunks, h_chunk=h_chunk)
        out2d = pl.pallas_call(
            kernel,
            out_shape=jax.ShapeDtypeStruct((M_pad, D), x.dtype),
            grid_spec=pltpu.PrefetchScalarGridSpec(
                num_scalar_prefetch=0,
                grid=(grid_m,),
                in_specs=[
                    pl.BlockSpec((tm_eff, D), lambda i: (i, 0)),          # x tile
                    pl.BlockSpec((D, H), lambda i: (0, 0),
                                 pipeline_mode=pl.Buffered(1)),           # W1 resident
                    pl.BlockSpec((1, H), lambda i: (0, 0),
                                 pipeline_mode=pl.Buffered(1)),           # b1
                    pl.BlockSpec((H, D), lambda i: (0, 0),
                                 pipeline_mode=pl.Buffered(1)),           # W2 resident
                    pl.BlockSpec((1, D), lambda i: (0, 0),
                                 pipeline_mode=pl.Buffered(1)),           # b2
                ],
                out_specs=pl.BlockSpec((tm_eff, D), lambda i: (i, 0)),
                scratch_shapes=[pltpu.VMEM((tm_eff, D), jnp.float32)],
            ),
            compiler_params=pltpu.CompilerParams(
                dimension_semantics=("parallel",),   # token axis shards across TCs
                vmem_limit_bytes=vmem_limit,
            ),
            cost_estimate=cost,
        )(x2d, w1, b1_2d, w2, b2_2d)
    else:
        h_blk = h_sz
        H_pad = _round_up(H, h_blk)
        grid_h = H_pad // h_blk
        if H_pad != H:
            # zero-padded hidden units contribute relu(x@0 + 0) @ 0 == 0
            w1p = jnp.pad(w1, ((0, 0), (0, H_pad - H)))
            b1p = jnp.pad(b1_2d, ((0, 0), (0, H_pad - H)))
            w2p = jnp.pad(w2, ((0, H_pad - H), (0, 0)))
        else:
            w1p, b1p, w2p = w1, b1_2d, w2
        need = _stream_vmem_bytes(tm_eff, D, h_blk, x_bytes, w_bytes)
        vmem_limit = min(int(vmem_cap * 0.85), max(need + (4 << 20), 16 << 20))
        out2d = pl.pallas_call(
            _ffn_kernel_stream,
            out_shape=jax.ShapeDtypeStruct((M_pad, D), x.dtype),
            grid_spec=pltpu.PrefetchScalarGridSpec(
                num_scalar_prefetch=0,
                grid=(grid_m, grid_h),
                in_specs=[
                    pl.BlockSpec((tm_eff, D), lambda i, h: (i, 0)),       # x tile
                    pl.BlockSpec((D, h_blk), lambda i, h: (0, h)),        # W1 h-block
                    pl.BlockSpec((1, h_blk), lambda i, h: (0, h)),        # b1 h-block
                    pl.BlockSpec((h_blk, D), lambda i, h: (h, 0)),        # W2 h-block
                    pl.BlockSpec((1, D), lambda i, h: (0, 0),
                                 pipeline_mode=pl.Buffered(1)),           # b2
                ],
                out_specs=pl.BlockSpec((tm_eff, D), lambda i, h: (i, 0)),
                scratch_shapes=[pltpu.VMEM((tm_eff, D), jnp.float32)],
            ),
            compiler_params=pltpu.CompilerParams(
                dimension_semantics=("parallel", "arbitrary"),
                vmem_limit_bytes=vmem_limit,
            ),
            cost_estimate=cost,
        )(x2d, w1p, b1p, w2p, b2_2d)

    if M_pad != M:
        out2d = out2d[:M]
    return out2d.reshape(B, S, D)


def init_params(key, d_embed, hidden, dtype=jnp.float32):
    """Deterministic nn.Linear-style init (uniform +/- 1/sqrt(fan_in))."""
    k1, k2, k3, k4 = jax.random.split(key, 4)
    bound1 = 1.0 / (d_embed ** 0.5)
    bound2 = 1.0 / (hidden ** 0.5)
    # Stored pre-transposed so the kernel computes x @ W (== x @ W_torch.T).
    w1 = jax.random.uniform(k1, (d_embed, hidden), dtype, -bound1, bound1)
    b1 = jax.random.uniform(k2, (hidden,), dtype, -bound1, bound1)
    w2 = jax.random.uniform(k3, (hidden, d_embed), dtype, -bound2, bound2)
    b2 = jax.random.uniform(k4, (d_embed,), dtype, -bound2, bound2)
    return w1, b1, w2, b2


if __name__ == "__main__":
    # Small shapes consistent with the module: batch=2, seq=8, d_embed=32, hidden=64
    B, S, D, H = 2, 8, 32, 64
    drop_prob = 0.1  # inference mode -> dropout is identity

    key = jax.random.PRNGKey(0)
    kx, kp = jax.random.split(key)
    x = jax.random.normal(kx, (B, S, D), jnp.float32)
    w1, b1, w2, b2 = init_params(kp, D, H)

    ref = (jnp.maximum(x.reshape(-1, D) @ w1 + b1, 0.0) @ w2 + b2).reshape(B, S, D)

    # f32, weight-resident path (tight check vs. plain-JAX reference)
    out = jax.block_until_ready(positionwise_feed_forward(x, w1, b1, w2, b2))
    assert out.shape == (B, S, D)
    assert jnp.allclose(out, ref, atol=1e-5, rtol=1e-5), "f32 resident mismatch"

    # f32, forced weight-streaming path (exercises the v7x large-layer plan)
    out_s = jax.block_until_ready(
        positionwise_feed_forward(x, w1, b1, w2, b2, force_mode="stream"))
    assert jnp.allclose(out_s, ref, atol=1e-5, rtol=1e-5), "f32 streaming mismatch"

    # bf16 weights/activations (production config: halves HBM/VMEM, bf16 MXU rate),
    # f32 accumulation inside the kernel; looser tolerance vs f32 reference.
    xb = x.astype(jnp.bfloat16)
    w1b, b1b, w2b, b2b = (p.astype(jnp.bfloat16) for p in (w1, b1, w2, b2))
    out_bf = jax.block_until_ready(positionwise_feed_forward(xb, w1b, b1b, w2b, b2b))
    assert out_bf.shape == (B, S, D)
    assert jnp.allclose(out_bf.astype(jnp.float32), ref, atol=7.5e-2, rtol=7.5e-2), \
        "bf16 mismatch vs reference"

    print("KERNEL_OK")
</pallas_src>

<mosaic_0001>
module attributes {stable_mosaic.version = 11 : i64} {
  func.func @_ffn_kernel_resident(%arg0: i32, %arg1: memref<8x32xf32, #tpu.memory_space<vmem>>, %arg2: memref<32x64xf32, #tpu.memory_space<vmem>>, %arg3: memref<1x64xf32, #tpu.memory_space<vmem>>, %arg4: memref<64x32xf32, #tpu.memory_space<vmem>>, %arg5: memref<1x32xf32, #tpu.memory_space<vmem>>, %arg6: memref<8x32xf32, #tpu.memory_space<vmem>>, %arg7: memref<8x32xf32, #tpu.memory_space<vmem>>) attributes {dimension_semantics = [#tpu.dimension_semantics<parallel>], iteration_bounds = array<i64: 2>, scalar_prefetch = 0 : i64, scratch_operands = 1 : i64, tpu.core_type = #tpu.core_type<tc>, window_params = [{transform_indices = @transform_0, window_bounds = array<i64: 8, 32>}, {pipeline_mode = #tpu.pipeline_mode<synchronous>, transform_indices = @transform_1, window_bounds = array<i64: 32, 64>}, {pipeline_mode = #tpu.pipeline_mode<synchronous>, transform_indices = @transform_2, window_bounds = array<i64: 1, 64>}, {pipeline_mode = #tpu.pipeline_mode<synchronous>, transform_indices = @transform_3, window_bounds = array<i64: 64, 32>}, {pipeline_mode = #tpu.pipeline_mode<synchronous>, transform_indices = @transform_4, window_bounds = array<i64: 1, 32>}, {transform_indices = @transform_5, window_bounds = array<i64: 8, 32>}]} {
    %c0 = arith.constant 0 : index
    %c0_0 = arith.constant 0 : index
    %0 = vector.load %arg1[%c0, %c0_0] : memref<8x32xf32, #tpu.memory_space<vmem>>, vector<8x32xf32>
    %c0_1 = arith.constant 0 : index
    %c0_2 = arith.constant 0 : index
    %1 = vector.load %arg2[%c0_1, %c0_2] : memref<32x64xf32, #tpu.memory_space<vmem>>, vector<32x64xf32>
    %cst = arith.constant dense<0.000000e+00> : vector<8x64xf32>
    %2 = tpu.matmul %0, %1, %cst {dimension_numbers = #tpu.dot_dimension_numbers<[1], [0], [0], [1], [0, 0, 1, 1], [], []>} : vector<8x32xf32>, vector<32x64xf32>, vector<8x64xf32> -> vector<8x64xf32>
    %c0_3 = arith.constant 0 : index
    %c0_4 = arith.constant 0 : index
    %3 = vector.load %arg3[%c0_3, %c0_4] : memref<1x64xf32, #tpu.memory_space<vmem>>, vector<1x64xf32>
    %4 = vector.broadcast %3 : vector<1x64xf32> to vector<8x64xf32>
    %5 = arith.addf %2, %4 : vector<8x64xf32>
    %cst_5 = arith.constant 0.000000e+00 : f32
    %6 = vector.broadcast %cst_5 : f32 to vector<8x64xf32>
    %7 = arith.maximumf %5, %6 : vector<8x64xf32>
    %c0_6 = arith.constant 0 : index
    %c0_7 = arith.constant 0 : index
    %8 = vector.load %arg4[%c0_6, %c0_7] : memref<64x32xf32, #tpu.memory_space<vmem>>, vector<64x32xf32>
    %cst_8 = arith.constant dense<0.000000e+00> : vector<8x32xf32>
    %9 = tpu.matmul %7, %8, %cst_8 {dimension_numbers = #tpu.dot_dimension_numbers<[1], [0], [0], [1], [0, 0, 1, 1], [], []>} : vector<8x64xf32>, vector<64x32xf32>, vector<8x32xf32> -> vector<8x32xf32>
    %c0_9 = arith.constant 0 : index
    %c0_10 = arith.constant 0 : index
    %10 = vector.load %arg7[%c0_9, %c0_10] : memref<8x32xf32, #tpu.memory_space<vmem>>, vector<8x32xf32>
    tpu.vector_store %arg7[%c0_9, %c0_10], %9 {strides = array<i32>} : memref<8x32xf32, #tpu.memory_space<vmem>>, vector<8x32xf32>,
    %c0_11 = arith.constant 0 : index
    %c0_12 = arith.constant 0 : index
    %11 = vector.load %arg7[%c0_11, %c0_12] : memref<8x32xf32, #tpu.memory_space<vmem>>, vector<8x32xf32>
    %c0_13 = arith.constant 0 : index
    %c0_14 = arith.constant 0 : index
    %12 = vector.load %arg5[%c0_13, %c0_14] : memref<1x32xf32, #tpu.memory_space<vmem>>, vector<1x32xf32>
    %13 = vector.broadcast %12 : vector<1x32xf32> to vector<8x32xf32>
    %14 = arith.addf %11, %13 : vector<8x32xf32>
    %c0_15 = arith.constant 0 : index
    %c0_16 = arith.constant 0 : index
    %15 = vector.load %arg6[%c0_15, %c0_16] : memref<8x32xf32, #tpu.memory_space<vmem>>, vector<8x32xf32>
    tpu.vector_store %arg6[%c0_15, %c0_16], %14 {strides = array<i32>} : memref<8x32xf32, #tpu.memory_space<vmem>>, vector<8x32xf32>,
    return
  }
  func.func @transform_0(%arg0: i32) -> (i32, i32) {
    %c0_i32 = arith.constant 0 : i32
    %c0_i32_0 = arith.constant 0 : i32
    return %arg0, %c0_i32 : i32, i32
  }
  func.func @transform_1(%arg0: i32) -> (i32, i32) {
    %c0_i32 = arith.constant 0 : i32
    %c0_i32_0 = arith.constant 0 : i32
    %c0_i32_1 = arith.constant 0 : i32
    return %c0_i32, %c0_i32_0 : i32, i32
  }
  func.func @transform_2(%arg0: i32) -> (i32, i32) {
    %c0_i32 = arith.constant 0 : i32
    %c0_i32_0 = arith.constant 0 : i32
    %c0_i32_1 = arith.constant 0 : i32
    return %c0_i32, %c0_i32_0 : i32, i32
  }
  func.func @transform_3(%arg0: i32) -> (i32, i32) {
    %c0_i32 = arith.constant 0 : i32
    %c0_i32_0 = arith.constant 0 : i32
    %c0_i32_1 = arith.constant 0 : i32
    return %c0_i32, %c0_i32_0 : i32, i32
  }
  func.func @transform_4(%arg0: i32) -> (i32, i32) {
    %c0_i32 = arith.constant 0 : i32
    %c0_i32_0 = arith.constant 0 : i32
    %c0_i32_1 = arith.constant 0 : i32
    return %c0_i32, %c0_i32_0 : i32, i32
  }
  func.func @transform_5(%arg0: i32) -> (i32, i32) {
    %c0_i32 = arith.constant 0 : i32
    %c0_i32_0 = arith.constant 0 : i32
    return %arg0, %c0_i32 : i32, i32
  }
}

</mosaic_0001>

<llo_original>
// kernel: positionwise_feed_forward.1
$region0: #{positionwise_feed_forward.1}
  #allocation0 [shape = 'u32[]', space=smem, size = 0x4, offset = 0x4, fixed_abs, tag = 'smem constant byte address 0x4 - core index']
  #allocation1 [shape = 'u32[144,128]{1,0:T(1,128)}', space=vmem, size = 0x12000, scoped, tag = 'internal scratch']
  #allocation2 [shape = 'f32[8,32]{1,0:T(8,128)}', space=vmem, size = 0x1000, scoped, tag = 'scratch operand']
  %s0 = inlined_call_operand.vmem [shape: f32[16,32], index: 0, kind: input, shape index: {}]
  %s1 = inlined_call_operand.vmem [shape: f32[32,64], index: 1, kind: input, shape index: {}]
  %s2 = inlined_call_operand.vmem [shape: f32[1,64], index: 2, kind: input, shape index: {}]
  %s3 = inlined_call_operand.vmem [shape: f32[64,32], index: 3, kind: input, shape index: {}]
  %s4 = inlined_call_operand.vmem [shape: f32[1,32], index: 4, kind: input, shape index: {}]
  %s5 = inlined_call_operand.hbm [shape: f32[16,32], index: 5, kind: output, shape index: {}]
  %s6 = sld [smem:[#allocation0]]
  $region53: #{positionwise_feed_forward.1} parent=0
    _
  %s8 = ssub.s32 1, %s6
  %s9 = scalar_select 0, %s8, %s6
  $region1: #{positionwise_feed_forward.1} parent=0
    #allocation3 [shape = 'u8[8192]{0}', space=vmem, size = 0x2000, scoped, tag = 'output window, operand 0']
    #allocation4 [shape = 's32[2]{0}', space=sflag, size = 0x8, scoped, tag = 'scoped memory for positionwise_feed_forward.1']
    %10 = vsyncpa [#allocation4], 0
    %s11 = scalar_lea.sflag [#allocation4], 1
    %12 = vsyncpa %s11, 0
    loop: start=0, step=1, limit=4
    $region2: #{positionwise_feed_forward.1} parent=1 // loop_pre_header
      _
    $region3: #{positionwise_feed_forward.1} parent=1 // loop_header
      %s14 = sphi 0, %s18
      %p15 = scmp.ge.s32.totalorder %s14, 4
      %s24 = sphi 0, %s26
      %s27 = sphi 0, %s24
      %s28 = sphi 0, %s27
      %s44 = sphi 0, %s28
      %s48 = sphi 0, %s48
      %s50 = sphi 0, %s48
      %s51 = sphi 0, %s50
      %s65 = sphi 0, %s51
      %s69 = sphi 0, %s69
      %s71 = sphi 0, %s69
      %s72 = sphi 0, %s71
      %s86 = sphi 0, %s72
      %s90 = sphi 0, %s90
      %s92 = sphi 0, %s90
      %s93 = sphi 0, %s92
      %s107 = sphi 0, %s93
      %s111 = sphi 0, %s111
      %s113 = sphi 0, %s111
      %s114 = sphi 0, %s113
      %s128 = sphi 0, %s114
      %s134 = sphi 0, %s136
      %s137 = sphi 0, %s134
      %s138 = sphi 0, %s137
      %s154 = sphi 0, %s138
    $region4: #{positionwise_feed_forward.1} parent=1 // loop_header_branch
      %17 = sbr.rel (%p15) target = $region8
    $region5: #{positionwise_feed_forward.1} parent=1 // loop_body
      %s19 = ssub.s32 %s14, 1
      %s20 = ssub.s32 %s14, 2
      %s21 = sadd.s32 %s14, 1
      %s22 = ssub.s32 %s14, %s21
      %p23 = scmp.eq.s32.totalorder %s22, 0
      %s25 = sadd.s32 %s24, 1
      %s26 = scalar_select %p23, %s24, %s25
      %p29 = pneg %p23
      %p30 = scmp.eq.s32.totalorder %s14, 1
      %p31 = por %p29, %p30
      %p32 = scmp.ne.s32.totalorder %s24, %s27
      %p33 = scmp.eq.s32.totalorder %s14, 0
      %p34 = por %p32, %p33
      %p35 = scmp.ne.s32.totalorder %s24, %s27
      %p36 = scmp.eq.s32.totalorder %s19, 1
      %p37 = por %p35, %p36
      %p38 = scmp.ne.s32.totalorder %s27, %s28
      %p39 = scmp.eq.s32.totalorder %s19, 0
      %p40 = por %p38, %p39
      %p41 = scmp.ne.s32.totalorder %s27, %s28
      %p42 = scmp.eq.s32.totalorder %s20, 1
      %p43 = por %p41, %p42
      %p45 = scmp.ne.s32.totalorder %s28, %s44
      %p46 = scmp.eq.s32.totalorder %s20, 0
      %p47 = por %p45, %p46
      %s49 = sadd.s32 %s48, 1
      %p52 = scmp.eq.s32.totalorder %s14, 1
      %p53 = scmp.ne.s32.totalorder %s48, %s50
      %p54 = scmp.eq.s32.totalorder %s14, 0
      %p55 = por %p53, %p54
      %p56 = scmp.ne.s32.totalorder %s48, %s50
      %p57 = scmp.eq.s32.totalorder %s19, 1
      %p58 = por %p56, %p57
      %p59 = scmp.ne.s32.totalorder %s50, %s51
      %p60 = scmp.eq.s32.totalorder %s19, 0
      %p61 = por %p59, %p60
      %p62 = scmp.ne.s32.totalorder %s50, %s51
      %p63 = scmp.eq.s32.totalorder %s20, 1
      %p64 = por %p62, %p63
      %p66 = scmp.ne.s32.totalorder %s51, %s65
      %p67 = scmp.eq.s32.totalorder %s20, 0
      %p68 = por %p66, %p67
      %s70 = sadd.s32 %s69, 1
      %p73 = scmp.eq.s32.totalorder %s14, 1
      %p74 = scmp.ne.s32.totalorder %s69, %s71
      %p75 = scmp.eq.s32.totalorder %s14, 0
      %p76 = por %p74, %p75
      %p77 = scmp.ne.s32.totalorder %s69, %s71
      %p78 = scmp.eq.s32.totalorder %s19, 1
      %p79 = por %p77, %p78
      %p80 = scmp.ne.s32.totalorder %s71, %s72
      %p81 = scmp.eq.s32.totalorder %s19, 0
      %p82 = por %p80, %p81
      %p83 = scmp.ne.s32.totalorder %s71, %s72
      %p84 = scmp.eq.s32.totalorder %s20, 1
      %p85 = por %p83, %p84
      %p87 = scmp.ne.s32.totalorder %s72, %s86
      %p88 = scmp.eq.s32.totalorder %s20, 0
      %p89 = por %p87, %p88
      %s91 = sadd.s32 %s90, 1
      %p94 = scmp.eq.s32.totalorder %s14, 1
      %p95 = scmp.ne.s32.totalorder %s90, %s92
      %p96 = scmp.eq.s32.totalorder %s14, 0
      %p97 = por %p95, %p96
      %p98 = scmp.ne.s32.totalorder %s90, %s92
      %p99 = scmp.eq.s32.totalorder %s19, 1
      %p100 = por %p98, %p99
      %p101 = scmp.ne.s32.totalorder %s92, %s93
      %p102 = scmp.eq.s32.totalorder %s19, 0
      %p103 = por %p101, %p102
      %p104 = scmp.ne.s32.totalorder %s92, %s93
      %p105 = scmp.eq.s32.totalorder %s20, 1
      %p106 = por %p104, %p105
      %p108 = scmp.ne.s32.totalorder %s93, %s107
      %p109 = scmp.eq.s32.totalorder %s20, 0
      %p110 = por %p108, %p109
      %s112 = sadd.s32 %s111, 1
      %p115 = scmp.eq.s32.totalorder %s14, 1
      %p116 = scmp.ne.s32.totalorder %s111, %s113
      %p117 = scmp.eq.s32.totalorder %s14, 0
      %p118 = por %p116, %p117
      %p119 = scmp.ne.s32.totalorder %s111, %s113
      %p120 = scmp.eq.s32.totalorder %s19, 1
      %p121 = por %p119, %p120
      %p122 = scmp.ne.s32.totalorder %s113, %s114
      %p123 = scmp.eq.s32.totalorder %s19, 0
      %p124 = por %p122, %p123
      %p125 = scmp.ne.s32.totalorder %s113, %s114
      %p126 = scmp.eq.s32.totalorder %s20, 1
      %p127 = por %p125, %p126
      %p129 = scmp.ne.s32.totalorder %s114, %s128
      %p130 = scmp.eq.s32.totalorder %s20, 0
      %p131 = por %p129, %p130
      %s132 = ssub.s32 %s14, %s21
      %p133 = scmp.eq.s32.totalorder %s132, 0
      %s135 = sadd.s32 %s134, 1
      %s136 = scalar_select %p133, %s134, %s135
      %p139 = pneg %p133
      %p140 = scmp.eq.s32.totalorder %s14, 1
      %p141 = por %p139, %p140
      %p142 = scmp.ne.s32.totalorder %s134, %s137
      %p143 = scmp.eq.s32.totalorder %s14, 0
      %p144 = por %p142, %p143
      %p145 = scmp.ne.s32.totalorder %s134, %s137
      %p146 = scmp.eq.s32.totalorder %s19, 1
      %p147 = por %p145, %p146
      %p148 = scmp.ne.s32.totalorder %s137, %s138
      %p149 = scmp.eq.s32.totalorder %s19, 0
      %p150 = por %p148, %p149
      %p151 = scmp.ne.s32.totalorder %s137, %s138
      %p152 = scmp.eq.s32.totalorder %s20, 1
      %p153 = por %p151, %p152
      %p155 = scmp.ne.s32.totalorder %s138, %s154
      %p156 = scmp.eq.s32.totalorder %s20, 0
      %p157 = por %p155, %p156
      %p158 = scmp.le.s32.totalorder 1, %s14
      %p159 = scmp.lt.s32.totalorder %s14, 3
      %p160 = pnand %p158, %p159
      %p161 = pneg %p160
      // Predicated region
      $region9: #{positionwise_feed_forward.1} parent=5 // pred_check
        _
      $region10: #{positionwise_feed_forward.1} parent=5 // pred_check_branch
        %163 = sbr.rel (%p160) target = $region12
      $region11: #{positionwise_feed_forward.1} parent=5 // pred_region
        %s164 = ssub.s32 %s14, 1
        // Predicated region
        $region13: #{positionwise_feed_forward.1} parent=11 // pred_check
          %p165 = pneg %p61
        $region14: #{positionwise_feed_forward.1} parent=11 // pred_check_branch
          %167 = sbr.rel (%p165) target = $region16
        $region15: #{positionwise_feed_forward.1} parent=11 // pred_region
          _
        $region16: #{positionwise_feed_forward.1} parent=11 // pred_fallthru
          _
        // Predicated region
        $region17: #{positionwise_feed_forward.1} parent=11 // pred_check
          %p168 = pneg %p82
        $region18: #{positionwise_feed_forward.1} parent=11 // pred_check_branch
          %170 = sbr.rel (%p168) target = $region20
        $region19: #{positionwise_feed_forward.1} parent=11 // pred_region
          _
        $region20: #{positionwise_feed_forward.1} parent=11 // pred_fallthru
          _
        // Predicated region
        $region21: #{positionwise_feed_forward.1} parent=11 // pred_check
          %p171 = pneg %p103
        $region22: #{positionwise_feed_forward.1} parent=11 // pred_check_branch
          %173 = sbr.rel (%p171) target = $region24
        $region23: #{positionwise_feed_forward.1} parent=11 // pred_region
          _
        $region24: #{positionwise_feed_forward.1} parent=11 // pred_fallthru
          _
        // Predicated region
        $region25: #{positionwise_feed_forward.1} parent=11 // pred_check
          %p174 = pneg %p124
        $region26: #{positionwise_feed_forward.1} parent=11 // pred_check_branch
          %176 = sbr.rel (%p174) target = $region28
        $region27: #{positionwise_feed_forward.1} parent=11 // pred_region
          _
        $region28: #{positionwise_feed_forward.1} parent=11 // pred_fallthru
          _
      $region12: #{positionwise_feed_forward.1} parent=5 // pred_fallthru
        _
      %p177 = scmp.lt.s32.totalorder %s14, 2
      // Predicated region
      $region29: #{positionwise_feed_forward.1} parent=5 // pred_check
        %p178 = pneg %p177
      $region30: #{positionwise_feed_forward.1} parent=5 // pred_check_branch
        %180 = sbr.rel (%p178) target = $region32
      $region31: #{positionwise_feed_forward.1} parent=5 // pred_region
        // Predicated region
        $region33: #{positionwise_feed_forward.1} parent=31 // pred_check
          %p181 = pneg %p34
        $region34: #{positionwise_feed_forward.1} parent=31 // pred_check_branch
          %183 = sbr.rel (%p181) target = $region36
        $region35: #{positionwise_feed_forward.1} parent=31 // pred_region
          %p184 = scmp.lt.s32.totalorder %s14, 1
          %s185 = scalar_select %p184, %s14, 1
          %s186 = smul.addr %s185, 8
          %s187 = scalar_lea.vmem %s0, %s186
        $region36: #{positionwise_feed_forward.1} parent=31 // pred_fallthru
          _
      $region32: #{positionwise_feed_forward.1} parent=5 // pred_fallthru
        _
      %p188 = scmp.le.s32.totalorder 1, %s14
      %p189 = scmp.lt.s32.totalorder %s14, 3
      %p190 = pnand %p188, %p189
      %p191 = pneg %p190
      // Predicated region
      $region37: #{positionwise_feed_forward.1} parent=5 // pred_check
        _
      $region38: #{positionwise_feed_forward.1} parent=5 // pred_check_branch
        %193 = sbr.rel (%p190) target = $region40
      $region39: #{positionwise_feed_forward.1} parent=5 // pred_region
        %s194 = ssub.s32 %s14, 1
        %p195 = scmp.lt.s32.totalorder %s19, 1
        %s196 = scalar_select %p195, %s19, 1
        %s197 = smul.addr %s196, 8
        %s198 = scalar_lea.vmem %s0, %s197
        %p199 = pneg %p40
        %p200 = pneg %p37
        %p201 = pneg %p61
        %p202 = pneg %p58
        %p203 = pneg %p82
        %p204 = pneg %p79
        %p205 = pneg %p103
        %p206 = pneg %p100
        %p207 = pneg %p124
        %p208 = pneg %p121
        %p209 = pneg %p150
        %p210 = pneg %p147
        %s211 = sand.u32 %s137, 1
        %s212 = scalar_lea.sflag [#allocation4], %s211
        %s213 = sand.u32 %s137, 1
        %s214 = smul.addr %s213, 8
        %s215 = scalar_lea.vmem [#allocation3], %s214
        %p216 = scmp.lt.s32.totalorder %s19, 1
        %s217 = scalar_select %p216, %s19, 1
        %s218 = smul.addr %s217, 8
        %s219 = scalar_lea.vmem %s0, %s218
        %v220 = vld [vmem:[%s219] sm:$0xff]
        %v221 = vld [vmem:[%s1] sm:$0xff]
        %v222 = vld [vmem:[%s1 + $0x8] sm:$0xff]
        %v223 = vld [vmem:[%s1 + $0x10] sm:$0xff]
        %v224 = vld [vmem:[%s1 + $0x18] sm:$0xff]
        %v225 = vld [vmem:[%s2] sm:$0x1]
        %v227 = vlaneseq
        %v228 = vshrl.u32 %v227, 7
        %v229 = vsub.s32 0, %v228
        %v230 = vrot.slane %v225, %v229
        %vm232 = vcmask 261120
        %v234 = vsel %vm232, %v220, 0
        %236 = vmatprep.subr.mxu0 0.0
        %237 = vmatpush1.msra.mxu0 %v221
        %238 = vmatprep.subr.mxu0 0.0
        %239 = vmatpush1.msra.mxu0 %v222
        %240 = vmatprep.subr.mxu0 0.0
        %241 = vmatpush1.msra.mxu0 %v223
        %242 = vmatprep.subr.mxu0 0.0
        %243 = vmatpush1.msra.mxu0 %v224
        %244 = vmatprep.subr.mxu0 0.0
        %245 = vmatpush1.msra.mxu0 0.0
        %246 = vmatprep.subr.mxu0 0.0
        %247 = vmatpush1.msra.mxu0 0.0
        %248 = vmatprep.subr.mxu0 0.0
        %249 = vmatpush1.msra.mxu0 0.0
        %250 = vmatprep.subr.mxu0 0.0
        %251 = vmatpush1.msra.mxu0 0.0
        %252 = vmatprep.subr.mxu0 0.0
        %253 = vmatpush1.msra.mxu0 0.0
        %254 = vmatprep.subr.mxu0 0.0
        %255 = vmatpush1.msra.mxu0 0.0
        %256 = vmatprep.subr.mxu0 0.0
        %257 = vmatpush1.msra.mxu0 0.0
        %258 = vmatprep.subr.mxu0 0.0
        %259 = vmatpush1.msra.mxu0 0.0
        %260 = vmatprep.subr.mxu0 0.0
        %261 = vmatpush1.msra.mxu0 0.0
        %262 = vmatprep.subr.mxu0 0.0
        %263 = vmatpush1.msra.mxu0 0.0
        %264 = vmatprep.subr.mxu0 0.0
        %265 = vmatpush1.msra.mxu0 0.0
        %266 = vmatprep.subr.mxu0 0.0
        %267 = vmatpush1.msra.mxu0 0.0
        %268 = vmatprep.subr.mxu0 0.0
        %269 = vmatpush1.msra.mxu0 0.0
        %270 = vmatprep.subr.mxu0 0.0
        %271 = vmatpush1.msra.mxu0 0.0
        %272 = vmatprep.subr.mxu0 0.0
        %273 = vmatpush1.msra.mxu0 0.0
        %274 = vmatprep.subr.mxu0 0.0
        %275 = vmatpush1.msra.mxu0 0.0
        %276 = vmatprep.subr.mxu0 0.0
        %277 = vmatpush1.msra.mxu0 0.0
        %278 = vmatprep.subr.mxu0 0.0
        %279 = vmatpush1.msra.mxu0 0.0
        %280 = vmatprep.subr.mxu0 0.0
        %281 = vmatpush1.msra.mxu0 0.0
        %282 = vmatprep.subr.mxu0 0.0
        %283 = vmatpush1.msra.mxu0 0.0
        %284 = vmatprep.subr.mxu0 0.0
        %285 = vmatpush1.msra.mxu0 0.0
        %286 = vmatprep.subr.mxu0 0.0
        %287 = vmatpush1.msra.mxu0 0.0
        %288 = vmatprep.subr.mxu0 0.0
        %289 = vmatpush1.msra.mxu0 0.0
        %290 = vmatprep.subr.mxu0 0.0
        %291 = vmatpush1.msra.mxu0 0.0
        %292 = vmatprep.subr.mxu0 0.0
        %293 = vmatpush1.msra.mxu0 0.0
        %294 = vmatprep.subr.mxu0 0.0
        %295 = vmatpush1.msra.mxu0 0.0
        %296 = vmatprep.subr.mxu0 0.0
        %297 = vmatpush1.msra.mxu0 0.0
        %298 = vmatprep.subr.mxu0 0.0
        %299 = vmatpush1.msra.mxu0 0.0
        %300 = vmatprep.mubr.f32.mxu0 0.0
        %301 = vmatmul.mubr.f32.gmra.mrb[0].mxu0 %v234
        %v302 = vpop.f32.mrb[0].mxu0
        %v303 = vadd.f32 %v230, %v302
        %v304 = vpop.f32.mrb[0].mxu0
        %305 = vdwg.mxu0
        %v306 = vmax.f32 %v303, 0.0
        %v307 = vld [vmem:[%s3] sm:$0xff]
        %v308 = vld [vmem:[%s3 + $0x8] sm:$0xff]
        %v309 = vld [vmem:[%s3 + $0x10] sm:$0xff]
        %v310 = vld [vmem:[%s3 + $0x18] sm:$0xff]
        %v311 = vld [vmem:[%s3 + $0x20] sm:$0xff]
        %v312 = vld [vmem:[%s3 + $0x28] sm:$0xff]
        %v313 = vld [vmem:[%s3 + $0x30] sm:$0xff]
        %v314 = vld [vmem:[%s3 + $0x38] sm:$0xff]
        %vm315 = vcmask 523264
        %v317 = vsel %vm315, %v306, 0
        %319 = vmatprep.subr.mxu0 0.0
        %320 = vmatpush1.msra.mxu0 %v307
        %321 = vmatprep.subr.mxu0 0.0
        %322 = vmatpush1.msra.mxu0 %v308
        %323 = vmatprep.subr.mxu0 0.0
        %324 = vmatpush1.msra.mxu0 %v309
        %325 = vmatprep.subr.mxu0 0.0
        %326 = vmatpush1.msra.mxu0 %v310
        %327 = vmatprep.subr.mxu0 0.0
        %328 = vmatpush1.msra.mxu0 %v311
        %329 = vmatprep.subr.mxu0 0.0
        %330 = vmatpush1.msra.mxu0 %v312
        %331 = vmatprep.subr.mxu0 0.0
        %332 = vmatpush1.msra.mxu0 %v313
        %333 = vmatprep.subr.mxu0 0.0
        %334 = vmatpush1.msra.mxu0 %v314
        %335 = vmatprep.subr.mxu0 0.0
        %336 = vmatpush1.msra.mxu0 0.0
        %337 = vmatprep.subr.mxu0 0.0
        %338 = vmatpush1.msra.mxu0 0.0
        %339 = vmatprep.subr.mxu0 0.0
        %340 = vmatpush1.msra.mxu0 0.0
        %341 = vmatprep.subr.mxu0 0.0
        %342 = vmatpush1.msra.mxu0 0.0
        %343 = vmatprep.subr.mxu0 0.0
        %344 = vmatpush1.msra.mxu0 0.0
        %345 = vmatprep.subr.mxu0 0.0
        %346 = vmatpush1.msra.mxu0 0.0
        %347 = vmatprep.subr.mxu0 0.0
        %348 = vmatpush1.msra.mxu0 0.0
        %349 = vmatprep.subr.mxu0 0.0
        %350 = vmatpush1.msra.mxu0 0.0
        %351 = vmatprep.subr.mxu0 0.0
        %352 = vmatpush1.msra.mxu0 0.0
        %353 = vmatprep.subr.mxu0 0.0
        %354 = vmatpush1.msra.mxu0 0.0
        %355 = vmatprep.subr.mxu0 0.0
        %356 = vmatpush1.msra.mxu0 0.0
        %357 = vmatprep.subr.mxu0 0.0
        %358 = vmatpush1.msra.mxu0 0.0
        %359 = vmatprep.subr.mxu0 0.0
        %360 = vmatpush1.msra.mxu0 0.0
        %361 = vmatprep.subr.mxu0 0.0
        %362 = vmatpush1.msra.mxu0 0.0
        %363 = vmatprep.subr.mxu0 0.0
        %364 = vmatpush1.msra.mxu0 0.0
        %365 = vmatprep.subr.mxu0 0.0
        %366 = vmatpush1.msra.mxu0 0.0
        %367 = vmatprep.subr.mxu0 0.0
        %368 = vmatpush1.msra.mxu0 0.0
        %369 = vmatprep.subr.mxu0 0.0
        %370 = vmatpush1.msra.mxu0 0.0
        %371 = vmatprep.subr.mxu0 0.0
        %372 = vmatpush1.msra.mxu0 0.0
        %373 = vmatprep.subr.mxu0 0.0
        %374 = vmatpush1.msra.mxu0 0.0
        %375 = vmatprep.subr.mxu0 0.0
        %376 = vmatpush1.msra.mxu0 0.0
        %377 = vmatprep.subr.mxu0 0.0
        %378 = vmatpush1.msra.mxu0 0.0
        %379 = vmatprep.subr.mxu0 0.0
        %380 = vmatpush1.msra.mxu0 0.0
        %381 = vmatprep.subr.mxu0 0.0
        %382 = vmatpush1.msra.mxu0 0.0
        %383 = vmatprep.mubr.f32.mxu0 0.0
        %384 = vmatmul.mubr.f32.gmra.mrb[0].mxu0 %v317
        %v385 = vpop.f32.mrb[0].mxu0
        %v386 = vadd.f32 0.0, %v385
        %v387 = vpop.f32.mrb[0].mxu0
        %388 = vdwg.mxu0
        %389 = vst.msk [vmem:[#allocation2] sm:$0xff] %vm232, %v386
        %v390 = vld [vmem:[#allocation2] sm:$0xff]
        %v391 = vld [vmem:[%s4] sm:$0x1]
        %v393 = vlaneseq
        %v394 = vshrl.u32 %v393, 7
        %v395 = vsub.s32 0, %v394
        %v396 = vrot.slane %v391, %v395
        %v398 = vadd.f32 %v390, %v396
        %399 = vst.msk [vmem:[%s215] sm:$0xff] %vm232, %v398
        %s400 = sand.u32 %s137, 1
        %s401 = scalar_lea.sflag [#allocation4], %s400
        %s402 = sand.u32 %s137, 1
        %s403 = smul.addr %s402, 8
        %s404 = scalar_lea.vmem [#allocation3], %s403
        // Predicated region
        $region41: #{positionwise_feed_forward.1} parent=39 // pred_check
          %p405 = pneg %p147
        $region42: #{positionwise_feed_forward.1} parent=39 // pred_check_branch
          %407 = sbr.rel (%p405) target = $region44
        $region43: #{positionwise_feed_forward.1} parent=39 // pred_region
          %s409 = ssub.s32 128, 128
          %410 = vsyncadd %s401, %s409
          %s411 = smul.addr %s19, 128
          %s412 = scalar_lea.hbm %s5, %s411
          %s414 = sshll.u32 %s404, 4
          %s415 = int_to_ptr.vmem [resolvable:$true] %s414
          %417 = dma.vmem_to_hbm [thread:$0]  %s415, 128, %s412, %s401
        $region44: #{positionwise_feed_forward.1} parent=39 // pred_fallthru
          _
      $region40: #{positionwise_feed_forward.1} parent=5 // pred_fallthru
        _
      %p418 = scmp.le.s32.totalorder 2, %s14
      // Predicated region
      $region45: #{positionwise_feed_forward.1} parent=5 // pred_check
        %p419 = pneg %p418
      $region46: #{positionwise_feed_forward.1} parent=5 // pred_check_branch
        %421 = sbr.rel (%p419) target = $region48
      $region47: #{positionwise_feed_forward.1} parent=5 // pred_region
        %s422 = ssub.s32 %s14, 2
        // Predicated region
        $region49: #{positionwise_feed_forward.1} parent=47 // pred_check
          %p423 = pneg %p153
        $region50: #{positionwise_feed_forward.1} parent=47 // pred_check_branch
          %425 = sbr.rel (%p423) target = $region52
        $region51: #{positionwise_feed_forward.1} parent=47 // pred_region
          %s426 = sand.u32 %s138, 1
          %s427 = scalar_lea.sflag [#allocation4], %s426
          %s428 = sand.u32 %s138, 1
          %s429 = smul.addr %s428, 8
          %s430 = scalar_lea.vmem [#allocation3], %s429
          %431 = dma.done %s427, 128
        $region52: #{positionwise_feed_forward.1} parent=47 // pred_fallthru
          _
      $region48: #{positionwise_feed_forward.1} parent=5 // pred_fallthru
        _
    $region6: #{positionwise_feed_forward.1} parent=1 // loop_footer
      %s18 = sadd.s32 1, %s14
    $region7: #{positionwise_feed_forward.1} parent=1 // loop_footer_branch
      %13 = sbr.rel target = $region3
    $region8: #{positionwise_feed_forward.1} parent=1 // loop_exit
      _
    %432 = vsyncpa [#allocation4], 1
    %s433 = scalar_lea.sflag [#allocation4], 1
    %434 = vsyncpa %s433, 1

</llo_original>
